<compile_context>
chip_gen: v7x
topology: tpu7x:2x2x1
jax: 0.10.0
libtpu: 0.0.40
codegen_flags: <defaults>
</compile_context>

<pallas_src>
import math

import jax
import jax.numpy as jnp
from jax.experimental import pallas as pl
from jax.experimental.pallas import tpu as pltpu


# ---------------------------------------------------------------------------
# Kernel
# ---------------------------------------------------------------------------
def _make_kernel(has_bias: bool, use_scratch: bool):
    """Build the (tm, tn) output-tile kernel.

    Grid = (M tiles, N tiles, K tiles); K is the innermost ("arbitrary") axis.
    use_scratch=False (f32 output): accumulate directly into the resident
    output block. use_scratch=True: f32 accumulator scratch, one downcast.
    """

    def kernel(x_ref, w_ref, *rest):
        if has_bias:
            b_ref, *rest = rest
        o_ref = rest[0]
        acc_ref = rest[1] if use_scratch else o_ref

        k = pl.program_id(2)

        @pl.when(k == 0)
        def _():
            acc_ref[...] = jnp.zeros_like(acc_ref)

        acc_ref[...] += jnp.dot(
            x_ref[...], w_ref[...], preferred_element_type=jnp.float32
        )

        if use_scratch or has_bias:
            @pl.when(k == pl.num_programs(2) - 1)
            def _():
                if use_scratch:
                    acc = acc_ref[...]
                    if has_bias:
                        acc = acc + b_ref[...]          # bias add in f32
                    o_ref[...] = acc.astype(o_ref.dtype)
                else:
                    # o_ref is the f32 accumulator itself; just add bias once.
                    o_ref[...] += b_ref[...].astype(o_ref.dtype)

    return kernel


# ---------------------------------------------------------------------------
# Hardware / tiling helpers
# ---------------------------------------------------------------------------
def _round_up(a, b):
    return (a + b - 1) // b * b


def _sublane_align(dtype):
    # f32 -> 8, bf16 -> 16, int8/fp8 -> 32 sublanes per vreg tile.
    return max(8, 32 // jnp.dtype(dtype).itemsize)


def _vmem_capacity_bytes():
    """Physical VMEM per TensorCore; conservative fallback if query fails."""
    try:
        info = pltpu.get_tpu_info()
        cap = getattr(info, "vmem_capacity_bytes", None)
        if cap:
            return int(cap)
    except Exception:
        pass
    return 64 * 1024 * 1024   # v7x per-TC size: safe lower bound everywhere


def _num_tensorcores():
    try:
        kind = getattr(jax.devices()[0], "device_kind", "").lower()
        if "v7" in kind:
            return 2
    except Exception:
        pass
    return 1


def _tile_and_pad(dim, align, cap, floor=None):
    """Choose a tile near `cap` (>= `floor` bias) and the padded dim it implies.

    Balanced split: padding is at most ~one `align` per tile, never the huge
    collapse-to-minimum-tile behavior of a divisibility-constrained search.
    Returns (tile, padded_dim); tile is a multiple of `align`, padded_dim a
    multiple of tile.
    """
    dim_a = _round_up(dim, align)
    cap_a = max(_round_up(cap, align), align)
    floor_a = min(_round_up(floor, align), dim_a) if floor else align
    target = max(min(cap_a, dim_a), floor_a)
    if dim_a <= target:
        return dim_a, dim_a
    nt = -(-dim_a // target)                       # number of tiles
    tile = _round_up(-(-dim_a // nt), align)       # balanced tile size
    return tile, tile * nt


def _vmem_usage(tm, tn, tk, itemsize, out_itemsize, has_bias, use_scratch):
    usage = 2 * tm * tk * itemsize           # x tile, double-buffered
    usage += 3 * tk * tn * itemsize          # weight tile (allow Buffered(3))
    if has_bias:
        usage += 2 * 8 * tn * 4              # bias tile (sublane-padded, f32)
    if use_scratch:
        usage += tm * tn * 4                 # f32 accumulator scratch
    usage += 2 * tm * tn * out_itemsize      # output tile, double-buffered
    return usage


def _weight_spec(tk, tn, deep_pipeline):
    idx = lambda i, j, k: (k, j)
    if deep_pipeline and hasattr(pl, "Buffered"):
        try:
            # 3-deep buffering hides the weight-stream DMA in the gm==1
            # (pure weight-streaming / decode-like) regime.
            return pl.BlockSpec((tk, tn), idx, pipeline_mode=pl.Buffered(3))
        except TypeError:
            pass  # older BlockSpec without pipeline_mode
    return pl.BlockSpec((tk, tn), idx)


# ---------------------------------------------------------------------------
# Wrapper
# ---------------------------------------------------------------------------
def mlp_layer(x, weight, bias=None, *, compute_dtype=None, out_dtype=None):
    """output = x @ weight (+ bias).  x: [M,K], weight: [K,N], bias: [N] or None.

    compute_dtype: dtype fed to the MXU (pass jnp.bfloat16 for the fast path on
                   v5e/v6e/v7x if reduced-precision inputs are acceptable);
                   accumulation is always f32.  Default keeps the input dtype
                   so f32 semantics match the PyTorch module exactly.
    out_dtype:     output dtype (default: x.dtype).
    """
    M, K = x.shape
    K2, N = weight.shape
    assert K == K2, "in_features mismatch"

    compute_dtype = jnp.dtype(
        compute_dtype if compute_dtype is not None
        else jnp.result_type(x.dtype, weight.dtype)
    )
    out_dtype = jnp.dtype(out_dtype if out_dtype is not None else x.dtype)

    x_c = x.astype(compute_dtype)
    w_c = weight.astype(compute_dtype)
    has_bias = bias is not None
    b_c = jnp.reshape(bias, (1, N)).astype(jnp.float32) if has_bias else None

    itemsize = compute_dtype.itemsize
    out_itemsize = out_dtype.itemsize
    m_align = max(_sublane_align(compute_dtype), _sublane_align(out_dtype))
    use_scratch = out_dtype != jnp.float32

    # -- generation-aware VMEM budget (75% of physical, capped) ---------------
    vmem_phys = _vmem_capacity_bytes()
    vmem_budget = min(int(vmem_phys * 0.75), 100 * 1024 * 1024)

    # -- tile caps: big output tiles to raise arithmetic intensity; larger
    #    still for bf16 on big-VMEM parts (v5e/v6e).  tk floor keeps the f32
    #    accumulator RMW amortized.
    cap_mn = 2048 if (itemsize <= 2 and vmem_budget >= 80 * 1024 * 1024) else 1024
    cap_m = cap_n = cap_mn
    cap_k = 1024 if itemsize >= 4 else 2048
    tk_floor = 512 if itemsize >= 4 else 1024

    while True:
        tm, Mp = _tile_and_pad(M, m_align, cap_m)
        tn, Np = _tile_and_pad(N, 128, cap_n)
        tk, Kp = _tile_and_pad(K, 128, cap_k, floor=tk_floor)
        if _vmem_usage(tm, tn, tk, itemsize, out_itemsize,
                       has_bias, use_scratch) <= vmem_budget:
            break
        if cap_n >= cap_m and cap_n > 256:
            cap_n //= 2
        elif cap_m > 256:
            cap_m //= 2
        elif cap_k // 2 >= max(tk_floor, 256):
            cap_k //= 2
        else:
            break  # smallest sensible tiles; let the limit absorb the rest

    gm, gn, gk = Mp // tm, Np // tn, Kp // tk

    # -- v7x megacore: make sure there are >=2 parallel tiles when possible ---
    if _num_tensorcores() >= 2 and gm * gn < 2 and Np >= 256:
        tn = (Np // 2) // 128 * 128
        gn = -(-Np // tn)
        Np = gn * tn

    # -- zero-pad only when needed (zeros along K add nothing; padded rows /
    #    cols are sliced off).  NOTE: a ragged weight costs one extra HBM
    #    round trip here for the padded copy; for repeated calls, pre-pad the
    #    weight once outside this wrapper.
    if (Mp, Kp) != (M, K):
        x_c = jnp.pad(x_c, ((0, Mp - M), (0, Kp - K)))
    if (Kp, Np) != (K, N):
        w_c = jnp.pad(w_c, ((0, Kp - K), (0, Np - N)))
    if has_bias and Np != N:
        b_c = jnp.pad(b_c, ((0, 0), (0, Np - N)))

    grid = (gm, gn, gk)
    deep_pipeline = (gm == 1) and (gn * gk >= 3)

    in_specs = [
        pl.BlockSpec((tm, tk), lambda i, j, k: (i, k)),     # x tile
        _weight_spec(tk, tn, deep_pipeline),                # weight tile
    ]
    inputs = [x_c, w_c]
    if has_bias:
        in_specs.append(pl.BlockSpec((1, tn), lambda i, j, k: (0, j)))
        inputs.append(b_c)

    scratch_shapes = [pltpu.VMEM((tm, tn), jnp.float32)] if use_scratch else []

    # bytes_accessed reflects actual streaming: x re-fetched per N tile,
    # weight re-fetched per M tile.
    cost = pl.CostEstimate(
        flops=2 * Mp * Np * Kp,
        transcendentals=0,
        bytes_accessed=(Mp * Kp * itemsize) * gn
        + (Kp * Np * itemsize) * gm
        + Mp * Np * out_itemsize
        + (Np * 4 if has_bias else 0),
    )

    out_padded = pl.pallas_call(
        _make_kernel(has_bias, use_scratch),
        out_shape=jax.ShapeDtypeStruct((Mp, Np), out_dtype),
        grid_spec=pltpu.PrefetchScalarGridSpec(
            num_scalar_prefetch=0,
            grid=grid,
            in_specs=in_specs,
            out_specs=pl.BlockSpec((tm, tn), lambda i, j, k: (i, j)),
            scratch_shapes=scratch_shapes,
        ),
        compiler_params=pltpu.CompilerParams(
            dimension_semantics=("parallel", "parallel", "arbitrary"),
            vmem_limit_bytes=vmem_budget,
        ),
        cost_estimate=cost,
    )(*inputs)

    if (Mp, Np) != (M, N):
        out_padded = out_padded[:M, :N]
    return out_padded


# ---------------------------------------------------------------------------
# Parameter init mirroring MLPLayer.reset_parameters
# ---------------------------------------------------------------------------
def init_mlp_params(key, in_features, out_features, bias=True, dtype=jnp.float32):
    """Mirrors torch .normal_(-stdv, stdv): Normal(mean=-stdv, std=stdv)."""
    stdv = 1.0 / math.sqrt(out_features)
    kw, kb = jax.random.split(key)
    weight = (-stdv + stdv * jax.random.normal(kw, (in_features, out_features))).astype(dtype)
    b = None
    if bias:
        b = (-stdv + stdv * jax.random.normal(kb, (out_features,))).astype(dtype)
    return weight, b


if __name__ == "__main__":
    key = jax.random.PRNGKey(0)
    k_in, k_param, k_in2 = jax.random.split(key, 3)

    # Case 1: f32 with bias, tiny shapes matching the module (8 x 32 -> 32).
    M, in_f, out_f = 8, 32, 32
    x = jax.random.normal(k_in, (M, in_f), dtype=jnp.float32)
    weight, bias = init_mlp_params(k_param, in_f, out_f, bias=True)

    out = jax.block_until_ready(mlp_layer(x, weight, bias))
    ref = x @ weight + bias
    assert out.shape == (M, out_f)
    assert jnp.allclose(out, ref, atol=1e-5, rtol=1e-5), "f32+bias mismatch"

    # Case 2: bias=None variant (no zero-bias DMA, separate kernel).
    out_nb = jax.block_until_ready(mlp_layer(x, weight, None))
    assert jnp.allclose(out_nb, x @ weight, atol=1e-5, rtol=1e-5), "no-bias mismatch"

    # Case 3: bf16 fast path, ragged N (exercises pad + lane-dense tiling).
    Mb, Kb, Nb = 64, 256, 320
    xb = jax.random.normal(k_in2, (Mb, Kb), dtype=jnp.float32)
    wb, bb = init_mlp_params(jax.random.PRNGKey(1), Kb, Nb, bias=True)
    out_bf = jax.block_until_ready(
        mlp_layer(
            xb.astype(jnp.bfloat16),
            wb.astype(jnp.bfloat16),
            bb,
            compute_dtype=jnp.bfloat16,
            out_dtype=jnp.bfloat16,
        )
    )
    ref_bf = (
        xb.astype(jnp.bfloat16).astype(jnp.float32)
        @ wb.astype(jnp.bfloat16).astype(jnp.float32)
        + bb
    )
    assert out_bf.shape == (Mb, Nb)
    assert jnp.allclose(out_bf.astype(jnp.float32), ref_bf, atol=3e-2, rtol=3e-2), (
        "bf16 mismatch"
    )

    print("KERNEL_OK")
</pallas_src>

<mosaic_0001>
module attributes {stable_mosaic.version = 11 : i64} {
  func.func @kernel(%arg0: i32, %arg1: i32, %arg2: i32, %arg3: memref<8x128xf32, #tpu.memory_space<vmem>>, %arg4: memref<128x128xf32, #tpu.memory_space<vmem>>, %arg5: memref<1x128xf32, #tpu.memory_space<vmem>>, %arg6: memref<8x128xf32, #tpu.memory_space<vmem>>) attributes {dimension_semantics = [#tpu.dimension_semantics<parallel>, #tpu.dimension_semantics<parallel>, #tpu.dimension_semantics<arbitrary>], iteration_bounds = array<i64: 1, 1, 1>, scalar_prefetch = 0 : i64, scratch_operands = 0 : i64, tpu.core_type = #tpu.core_type<tc>, window_params = [{transform_indices = @transform_0, window_bounds = array<i64: 8, 128>}, {transform_indices = @transform_1, window_bounds = array<i64: 128, 128>}, {transform_indices = @transform_2, window_bounds = array<i64: 1, 128>}, {transform_indices = @transform_3, window_bounds = array<i64: 8, 128>}]} {
    %c0_i32 = arith.constant 0 : i32
    %0 = arith.cmpi eq, %arg2, %c0_i32 : i32
    %1 = arith.extui %0 : i1 to i32
    %c0_i32_0 = arith.constant 0 : i32
    %2 = arith.cmpi ne, %1, %c0_i32_0 : i32
    scf.if %2 {
      %cst_10 = arith.constant 0.000000e+00 : f32
      %12 = vector.broadcast %cst_10 : f32 to vector<8x128xf32>
      %c0_11 = arith.constant 0 : index
      %c0_12 = arith.constant 0 : index
      %13 = vector.load %arg6[%c0_11, %c0_12] : memref<8x128xf32, #tpu.memory_space<vmem>>, vector<8x128xf32>
      tpu.vector_store %arg6[%c0_11, %c0_12], %12 {strides = array<i32>} : memref<8x128xf32, #tpu.memory_space<vmem>>, vector<8x128xf32>,
    } else {
    }
    %c0 = arith.constant 0 : index
    %c0_1 = arith.constant 0 : index
    %3 = vector.load %arg6[%c0, %c0_1] : memref<8x128xf32, #tpu.memory_space<vmem>>, vector<8x128xf32>
    %c0_2 = arith.constant 0 : index
    %c0_3 = arith.constant 0 : index
    %4 = vector.load %arg3[%c0_2, %c0_3] : memref<8x128xf32, #tpu.memory_space<vmem>>, vector<8x128xf32>
    %c0_4 = arith.constant 0 : index
    %c0_5 = arith.constant 0 : index
    %5 = vector.load %arg4[%c0_4, %c0_5] : memref<128x128xf32, #tpu.memory_space<vmem>>, vector<128x128xf32>
    %cst = arith.constant dense<0.000000e+00> : vector<8x128xf32>
    %6 = tpu.matmul %4, %5, %cst {dimension_numbers = #tpu.dot_dimension_numbers<[1], [0], [0], [1], [0, 0, 1, 1], [], []>} : vector<8x128xf32>, vector<128x128xf32>, vector<8x128xf32> -> vector<8x128xf32>
    %7 = arith.addf %3, %6 : vector<8x128xf32>
    %c0_6 = arith.constant 0 : index
    %c0_7 = arith.constant 0 : index
    %8 = vector.load %arg6[%c0_6, %c0_7] : memref<8x128xf32, #tpu.memory_space<vmem>>, vector<8x128xf32>
    tpu.vector_store %arg6[%c0_6, %c0_7], %7 {strides = array<i32>} : memref<8x128xf32, #tpu.memory_space<vmem>>, vector<8x128xf32>,
    %c0_i32_8 = arith.constant 0 : i32
    %9 = arith.cmpi eq, %arg2, %c0_i32_8 : i32
    %10 = arith.extui %9 : i1 to i32
    %c0_i32_9 = arith.constant 0 : i32
    %11 = arith.cmpi ne, %10, %c0_i32_9 : i32
    scf.if %11 {
      %c0_10 = arith.constant 0 : index
      %c0_11 = arith.constant 0 : index
      %12 = vector.load %arg6[%c0_10, %c0_11] : memref<8x128xf32, #tpu.memory_space<vmem>>, vector<8x128xf32>
      %c0_12 = arith.constant 0 : index
      %c0_13 = arith.constant 0 : index
      %13 = vector.load %arg5[%c0_12, %c0_13] : memref<1x128xf32, #tpu.memory_space<vmem>>, vector<1x128xf32>
      %14 = vector.broadcast %13 : vector<1x128xf32> to vector<8x128xf32>
      %15 = arith.addf %12, %14 : vector<8x128xf32>
      %c0_14 = arith.constant 0 : index
      %c0_15 = arith.constant 0 : index
      %16 = vector.load %arg6[%c0_14, %c0_15] : memref<8x128xf32, #tpu.memory_space<vmem>>, vector<8x128xf32>
      tpu.vector_store %arg6[%c0_14, %c0_15], %15 {strides = array<i32>} : memref<8x128xf32, #tpu.memory_space<vmem>>, vector<8x128xf32>,
    } else {
    }
    return
  }
  func.func @transform_0(%arg0: i32, %arg1: i32, %arg2: i32) -> (i32, i32) {
    %c0_i32 = arith.constant 0 : i32
    return %arg0, %arg2 : i32, i32
  }
  func.func @transform_1(%arg0: i32, %arg1: i32, %arg2: i32) -> (i32, i32) {
    %c0_i32 = arith.constant 0 : i32
    return %arg2, %arg1 : i32, i32
  }
  func.func @transform_2(%arg0: i32, %arg1: i32, %arg2: i32) -> (i32, i32) {
    %c0_i32 = arith.constant 0 : i32
    %c0_i32_0 = arith.constant 0 : i32
    return %c0_i32, %arg1 : i32, i32
  }
  func.func @transform_3(%arg0: i32, %arg1: i32, %arg2: i32) -> (i32, i32) {
    %c0_i32 = arith.constant 0 : i32
    return %arg0, %arg1 : i32, i32
  }
}

</mosaic_0001>

<llo_original>
// kernel: tpu_custom_call.1
$region0: #{tpu_custom_call.1}
  #allocation0 [shape = 'u32[]', space=smem, size = 0x4, offset = 0x4, fixed_abs, tag = 'smem constant byte address 0x4 - core index']
  #allocation1 [shape = 'u32[144,128]{1,0:T(1,128)}', space=vmem, size = 0x12000, scoped, tag = 'internal scratch']
  %s0 = inlined_call_operand.hbm [shape: f32[8,128], index: 0, kind: input, shape index: {}]
  %s1 = inlined_call_operand.hbm [shape: f32[128,128], index: 1, kind: input, shape index: {}]
  %s2 = inlined_call_operand.vmem [shape: f32[1,128], index: 2, kind: input, shape index: {}]
  %s3 = inlined_call_operand.hbm [shape: f32[8,128], index: 3, kind: output, shape index: {}]
  %s4 = sld [smem:[#allocation0]]
  $region38: #{tpu_custom_call.1} parent=0
    _
  %s6 = ssub.s32 1, %s4
  %s7 = scalar_select 0, %s6, %s4
  $region1: #{tpu_custom_call.1} parent=0
    #allocation2 [shape = 'u8[4096]{0}', space=vmem, size = 0x1000, scoped, tag = 'input window, operand 0, single buffered']
    #allocation3 [shape = 's32[1]{0}', space=sflag, size = 0x4, scoped, tag = 'scoped memory for tpu_custom_call.1']
    #allocation4 [shape = 's32[1]{0}', space=sflag, size = 0x4, scoped, tag = 'scoped memory for tpu_custom_call.1']
    #allocation5 [shape = 'u8[65536]{0}', space=vmem, size = 0x10000, scoped, tag = 'input window, operand 1, single buffered']
    #allocation6 [shape = 's32[1]{0}', space=sflag, size = 0x4, scoped, tag = 'scoped memory for tpu_custom_call.1']
    #allocation7 [shape = 'u8[4096]{0}', space=vmem, size = 0x1000, scoped, tag = 'output window, operand 0, single buffered']
    %8 = vsyncpa [#allocation3], 0
    %9 = vsyncpa [#allocation6], 0
    %10 = vsyncpa [#allocation4], 0
    // Predicated region
    $region2: #{tpu_custom_call.1} parent=1 // pred_check
      _
    $region3: #{tpu_custom_call.1} parent=1 // pred_check_branch
      %12 = sbr.rel (0) target = $region5
    $region4: #{tpu_custom_call.1} parent=1 // pred_region
      %s14 = ssub.s32 128, 128
      %15 = vsyncadd [#allocation3], %s14
      %s17 = sshll.u32 [#allocation2], 4
      %s18 = int_to_ptr.vmem [resolvable:$true] %s17
      %20 = dma.hbm_to_vmem [thread:$0]  %s0, 128, %s18, [#allocation3]
    $region5: #{tpu_custom_call.1} parent=1 // pred_fallthru
      _
    // Predicated region
    $region6: #{tpu_custom_call.1} parent=1 // pred_check
      _
    $region7: #{tpu_custom_call.1} parent=1 // pred_check_branch
      %22 = sbr.rel (0) target = $region9
    $region8: #{tpu_custom_call.1} parent=1 // pred_region
      %s24 = ssub.s32 2048, 2048
      %25 = vsyncadd [#allocation6], %s24
      %s26 = sshll.u32 [#allocation5], 4
      %s27 = int_to_ptr.vmem [resolvable:$true] %s26
      %32 = dma.hbm_to_vmem [thread:$0]  %s1, 2048, %s27, [#allocation6], 128, 128, 8
    $region9: #{tpu_custom_call.1} parent=1 // pred_fallthru
      _
    // Predicated region
    $region10: #{tpu_custom_call.1} parent=1 // pred_check
      _
    $region11: #{tpu_custom_call.1} parent=1 // pred_check_branch
      %34 = sbr.rel (0) target = $region13
    $region12: #{tpu_custom_call.1} parent=1 // pred_region
      _
    $region13: #{tpu_custom_call.1} parent=1 // pred_fallthru
      _
    // Predicated region
    $region14: #{tpu_custom_call.1} parent=1 // pred_check
      _
    $region15: #{tpu_custom_call.1} parent=1 // pred_check_branch
      %36 = sbr.rel (0) target = $region17
    $region16: #{tpu_custom_call.1} parent=1 // pred_region
      %37 = dma.done [#allocation3], 128
    $region17: #{tpu_custom_call.1} parent=1 // pred_fallthru
      _
    // Predicated region
    $region18: #{tpu_custom_call.1} parent=1 // pred_check
      _
    $region19: #{tpu_custom_call.1} parent=1 // pred_check_branch
      %39 = sbr.rel (0) target = $region21
    $region20: #{tpu_custom_call.1} parent=1 // pred_region
      %40 = dma.done [#allocation6], 2048
    $region21: #{tpu_custom_call.1} parent=1 // pred_fallthru
      _
    %p41 = scmp.eq.s32.totalorder 0, 0
    // Predicated region
    $region22: #{tpu_custom_call.1} parent=1 // pred_check
      %p42 = pneg %p41
    $region23: #{tpu_custom_call.1} parent=1 // pred_check_branch
      %44 = sbr.rel (%p42) target = $region25
    $region24: #{tpu_custom_call.1} parent=1 // pred_region
      %45 = vst [vmem:[#allocation7] sm:$0xff] 0.0
    $region25: #{tpu_custom_call.1} parent=1 // pred_fallthru
      _
    %v46 = vld [vmem:[#allocation7] sm:$0xff]
    %v47 = vld [vmem:[#allocation2] sm:$0xff]
    %v48 = vld [vmem:[#allocation5] sm:$0xff]
    %v49 = vld [vmem:[#allocation5 + $0x8] sm:$0xff]
    %v50 = vld [vmem:[#allocation5 + $0x10] sm:$0xff]
    %v51 = vld [vmem:[#allocation5 + $0x18] sm:$0xff]
    %v52 = vld [vmem:[#allocation5 + $0x20] sm:$0xff]
    %v53 = vld [vmem:[#allocation5 + $0x28] sm:$0xff]
    %v54 = vld [vmem:[#allocation5 + $0x30] sm:$0xff]
    %v55 = vld [vmem:[#allocation5 + $0x38] sm:$0xff]
    %v56 = vld [vmem:[#allocation5 + $0x40] sm:$0xff]
    %v57 = vld [vmem:[#allocation5 + $0x48] sm:$0xff]
    %v58 = vld [vmem:[#allocation5 + $0x50] sm:$0xff]
    %v59 = vld [vmem:[#allocation5 + $0x58] sm:$0xff]
    %v60 = vld [vmem:[#allocation5 + $0x60] sm:$0xff]
    %v61 = vld [vmem:[#allocation5 + $0x68] sm:$0xff]
    %v62 = vld [vmem:[#allocation5 + $0x70] sm:$0xff]
    %v63 = vld [vmem:[#allocation5 + $0x78] sm:$0xff]
    %64 = vmatprep.subr.mxu0 0.0
    %65 = vmatpush1.msra.mxu0 %v48
    %66 = vmatprep.subr.mxu0 0.0
    %67 = vmatpush1.msra.mxu0 %v49
    %68 = vmatprep.subr.mxu0 0.0
    %69 = vmatpush1.msra.mxu0 %v50
    %70 = vmatprep.subr.mxu0 0.0
    %71 = vmatpush1.msra.mxu0 %v51
    %72 = vmatprep.subr.mxu0 0.0
    %73 = vmatpush1.msra.mxu0 %v52
    %74 = vmatprep.subr.mxu0 0.0
    %75 = vmatpush1.msra.mxu0 %v53
    %76 = vmatprep.subr.mxu0 0.0
    %77 = vmatpush1.msra.mxu0 %v54
    %78 = vmatprep.subr.mxu0 0.0
    %79 = vmatpush1.msra.mxu0 %v55
    %80 = vmatprep.subr.mxu0 0.0
    %81 = vmatpush1.msra.mxu0 %v56
    %82 = vmatprep.subr.mxu0 0.0
    %83 = vmatpush1.msra.mxu0 %v57
    %84 = vmatprep.subr.mxu0 0.0
    %85 = vmatpush1.msra.mxu0 %v58
    %86 = vmatprep.subr.mxu0 0.0
    %87 = vmatpush1.msra.mxu0 %v59
    %88 = vmatprep.subr.mxu0 0.0
    %89 = vmatpush1.msra.mxu0 %v60
    %90 = vmatprep.subr.mxu0 0.0
    %91 = vmatpush1.msra.mxu0 %v61
    %92 = vmatprep.subr.mxu0 0.0
    %93 = vmatpush1.msra.mxu0 %v62
    %94 = vmatprep.subr.mxu0 0.0
    %95 = vmatpush1.msra.mxu0 %v63
    %96 = vmatprep.subr.mxu0 0.0
    %97 = vmatpush1.msra.mxu0 0.0
    %98 = vmatprep.subr.mxu0 0.0
    %99 = vmatpush1.msra.mxu0 0.0
    %100 = vmatprep.subr.mxu0 0.0
    %101 = vmatpush1.msra.mxu0 0.0
    %102 = vmatprep.subr.mxu0 0.0
    %103 = vmatpush1.msra.mxu0 0.0
    %104 = vmatprep.subr.mxu0 0.0
    %105 = vmatpush1.msra.mxu0 0.0
    %106 = vmatprep.subr.mxu0 0.0
    %107 = vmatpush1.msra.mxu0 0.0
    %108 = vmatprep.subr.mxu0 0.0
    %109 = vmatpush1.msra.mxu0 0.0
    %110 = vmatprep.subr.mxu0 0.0
    %111 = vmatpush1.msra.mxu0 0.0
    %112 = vmatprep.subr.mxu0 0.0
    %113 = vmatpush1.msra.mxu0 0.0
    %114 = vmatprep.subr.mxu0 0.0
    %115 = vmatpush1.msra.mxu0 0.0
    %116 = vmatprep.subr.mxu0 0.0
    %117 = vmatpush1.msra.mxu0 0.0
    %118 = vmatprep.subr.mxu0 0.0
    %119 = vmatpush1.msra.mxu0 0.0
    %120 = vmatprep.subr.mxu0 0.0
    %121 = vmatpush1.msra.mxu0 0.0
    %122 = vmatprep.subr.mxu0 0.0
    %123 = vmatpush1.msra.mxu0 0.0
    %124 = vmatprep.subr.mxu0 0.0
    %125 = vmatpush1.msra.mxu0 0.0
    %126 = vmatprep.subr.mxu0 0.0
    %127 = vmatpush1.msra.mxu0 0.0
    %128 = vmatprep.mubr.f32.mxu0 0.0
    %129 = vmatmul.mubr.f32.gmra.mrb[0].mxu0 %v47
    %v130 = vpop.f32.mrb[0].mxu0
    %v131 = vadd.f32 0.0, %v130
    %v132 = vpop.f32.mrb[0].mxu0
    %133 = vdwg.mxu0
    %v134 = vadd.f32 %v46, %v131
    %135 = vst [vmem:[#allocation7] sm:$0xff] %v134
    // Predicated region
    $region26: #{tpu_custom_call.1} parent=1 // pred_check
      %p136 = pneg %p41
    $region27: #{tpu_custom_call.1} parent=1 // pred_check_branch
      %138 = sbr.rel (%p136) target = $region29
    $region28: #{tpu_custom_call.1} parent=1 // pred_region
      %v139 = vld [vmem:[#allocation7] sm:$0xff]
      %v140 = vld [vmem:[%s2] sm:$0x1]
      %v142 = vlaneseq
      %v143 = vshrl.u32 %v142, 7
      %v144 = vsub.s32 0, %v143
      %v145 = vrot.slane %v140, %v144
      %v147 = vadd.f32 %v139, %v145
      %148 = vst [vmem:[#allocation7] sm:$0xff] %v147
    $region29: #{tpu_custom_call.1} parent=1 // pred_fallthru
      _
    // Predicated region
    $region30: #{tpu_custom_call.1} parent=1 // pred_check
      _
    $region31: #{tpu_custom_call.1} parent=1 // pred_check_branch
      %150 = sbr.rel (0) target = $region33
    $region32: #{tpu_custom_call.1} parent=1 // pred_region
      %s152 = ssub.s32 128, 128
      %153 = vsyncadd [#allocation4], %s152
      %s155 = sshll.u32 [#allocation7], 4
      %s156 = int_to_ptr.vmem [resolvable:$true] %s155
      %158 = dma.vmem_to_hbm [thread:$0]  %s156, 128, %s3, [#allocation4]
    $region33: #{tpu_custom_call.1} parent=1 // pred_fallthru
      _
    // Predicated region
    $region34: #{tpu_custom_call.1} parent=1 // pred_check
      _
    $region35: #{tpu_custom_call.1} parent=1 // pred_check_branch
      %160 = sbr.rel (0) target = $region37
    $region36: #{tpu_custom_call.1} parent=1 // pred_region
      %161 = dma.done [#allocation4], 128
    $region37: #{tpu_custom_call.1} parent=1 // pred_fallthru
      _
    %162 = vsyncpa [#allocation3], 1
    %163 = vsyncpa [#allocation6], 1
    %164 = vsyncpa [#allocation4], 1

</llo_original>
